<compile_context>
chip_gen: v7x
topology: tpu7x:2x2x1
jax: 0.10.0
libtpu: 0.0.40
codegen_flags: <defaults>
</compile_context>

<pallas_src>
import functools
import math

import jax
import jax.numpy as jnp
from jax import lax
from jax.experimental import pallas as pl
from jax.experimental.pallas import tpu as pltpu


# ---------------------------------------------------------------------------
# Kernel 1: sequence-wide input projection  gates_x = X @ W_ih^T + b
# Tiled over rows and auto-pipelined (mem-bound matmul).
# ---------------------------------------------------------------------------
def _input_proj_kernel(x_ref, w_ref, b_ref, out_ref):
    acc = jnp.dot(x_ref[...], w_ref[...], preferred_element_type=jnp.float32)
    out_ref[...] = (acc + b_ref[...]).astype(out_ref.dtype)


# ---------------------------------------------------------------------------
# Kernel 2: LSTM recurrence.  Grid = (batch blocks, time chunks).
# One fused lane-dense (H, 4H) recurrent matmul per timestep; h/c state lives
# in VMEM scratch across time chunks; final state stored once.
# ---------------------------------------------------------------------------
def _lstm_recurrence_kernel(gx_ref, whh_ref, hidden_ref, cell_ref,
                            h_scr, c_scr, *, t_chunk, hidden_size, unroll):
    t_blk = pl.program_id(1)

    @pl.when(t_blk == 0)
    def _():
        h_scr[...] = jnp.zeros_like(h_scr)
        c_scr[...] = jnp.zeros_like(c_scr)

    # Single fused recurrent weight tile (H, 4H); hoisted once per chunk.
    whh = whh_ref[...]
    H = hidden_size

    def step(t, carry):
        h, c = carry
        # Lane-dense (B, 4H) pre-activation; gx already contains x@W_ih^T + b.
        gates = (gx_ref[t].astype(jnp.float32)
                 + jnp.dot(h.astype(whh.dtype), whh,
                           preferred_element_type=jnp.float32))
        # 3 EUP pushes per step: sigmoid(all 4H), tanh(g slice), tanh(c_new).
        sig = jax.nn.sigmoid(gates)
        i_g = sig[:, 0 * H:1 * H]
        f_g = sig[:, 1 * H:2 * H]
        o_g = sig[:, 3 * H:4 * H]
        g_g = jnp.tanh(gates[:, 2 * H:3 * H])
        c_new = f_g * c + i_g * g_g
        h_new = o_g * jnp.tanh(c_new)
        return (h_new, c_new)

    h_f, c_f = lax.fori_loop(0, t_chunk, step, (h_scr[...], c_scr[...]),
                             unroll=unroll)
    h_scr[...] = h_f
    c_scr[...] = c_f

    # Single store of the final state (v5e has one vst slot; don't store/step).
    @pl.when(t_blk == pl.num_programs(1) - 1)
    def _():
        hidden_ref[0] = h_f.astype(hidden_ref.dtype)
        cell_ref[0] = c_f.astype(cell_ref.dtype)


# ---------------------------------------------------------------------------
# Wrapper
# ---------------------------------------------------------------------------
def _num_tensorcores_per_chip():
    """Best-effort generation detection: v7x has 2 TensorCores per chip."""
    try:
        kind = jax.devices()[0].device_kind.lower()
        if ("v7" in kind) or ("tpu7" in kind):
            return 2
    except Exception:  # detection is best-effort only
        pass
    return 1


def _pick_time_chunk(seq_len, max_chunk=64):
    """Largest divisor of seq_len that is <= max_chunk (bounded VMEM/chunk)."""
    if seq_len <= max_chunk:
        return seq_len
    for cand in range(max_chunk, 0, -1):
        if seq_len % cand == 0:
            return cand
    return seq_len


def encoder_forward(tokens, params, *, matmul_dtype=jnp.float32):
    """tokens: (S, B) int32 token ids. Returns (hidden, cell), each (1, B, H)."""
    emb = params["embedding"]                 # (V, H)
    w_ih = params["w_ih"]                     # (4H, H)  -- PyTorch layout
    w_hh = params["w_hh"]                     # (4H, H)
    bias = params["b_ih"] + params["b_hh"]    # (4H,)

    V, H = emb.shape
    S, B = tokens.shape
    G = 4 * H
    itemsize = jnp.dtype(matmul_dtype).itemsize

    # Embedding gather in the wrapper (data-dependent; cheap XLA gather).
    # TODO(synk): fuse the gather into kernel 1 via scalar-prefetch row
    # index_map once vocab / S*B grow large enough to matter.
    x = emb[tokens].astype(jnp.float32)       # (S, B, H)

    # --- generation-aware batch blocking ------------------------------------
    SUBLANE = 8
    cores = _num_tensorcores_per_chip()
    pad_unit = SUBLANE * cores
    B_pad = max(pad_unit, ((B + pad_unit - 1) // pad_unit) * pad_unit)
    num_b_blocks = cores                       # one block per TensorCore
    B_BLK = B_pad // num_b_blocks
    # Bound per-block VMEM residency for very large batches.
    while B_BLK > 512 and B_BLK % 16 == 0:
        num_b_blocks *= 2
        B_BLK //= 2
    if B_pad != B:
        x = jnp.pad(x, ((0, 0), (0, B_pad - B), (0, 0)))

    # --- Pallas kernel 1: sequence-wide input projection --------------------
    M = S * B_pad
    M_TILE = min(512, M)                       # M is a multiple of 8
    num_m = -(-M // M_TILE)
    M_full = num_m * M_TILE
    x_flat = x.reshape(M, H)
    if M_full != M:
        x_flat = jnp.pad(x_flat, ((0, M_full - M), (0, 0)))

    x_flat = x_flat.astype(matmul_dtype)
    w_ih_t = w_ih.T.astype(matmul_dtype)       # (H, 4H), [i,f,g,o] columns
    b_row = bias.reshape(1, G).astype(jnp.float32)

    k1_vmem = 2 * (M_TILE * H * itemsize + M_TILE * G * itemsize
                   + H * G * itemsize + G * 4) + (4 << 20)
    k1_vmem = min(int(k1_vmem), 100 << 20)

    gates_x = pl.pallas_call(
        _input_proj_kernel,
        out_shape=jax.ShapeDtypeStruct((M_full, G), matmul_dtype),
        grid_spec=pltpu.PrefetchScalarGridSpec(
            num_scalar_prefetch=0,
            grid=(num_m,),
            in_specs=[pl.BlockSpec((M_TILE, H), lambda i: (i, 0)),
                      pl.BlockSpec((H, G), lambda i: (0, 0)),
                      pl.BlockSpec((1, G), lambda i: (0, 0))],
            out_specs=pl.BlockSpec((M_TILE, G), lambda i: (i, 0)),
        ),
        compiler_params=pltpu.CompilerParams(
            dimension_semantics=("parallel",),
            vmem_limit_bytes=k1_vmem),
    )(x_flat, w_ih_t, b_row)

    # One lane-dense (S, B_pad, 4H) tensor; no per-gate slicing in the wrapper.
    gates_x = gates_x[:M].reshape(S, B_pad, G)

    # --- Pallas kernel 2: recurrence -----------------------------------------
    w_hh_cat = w_hh.T.astype(matmul_dtype)     # (H, 4H), [i,f,g,o] columns

    T_CHUNK = _pick_time_chunk(S)
    num_t_chunks = S // T_CHUNK
    unroll = min(T_CHUNK, 8)

    kernel = functools.partial(_lstm_recurrence_kernel,
                               t_chunk=T_CHUNK, hidden_size=H, unroll=unroll)

    gx_spec = pl.BlockSpec((T_CHUNK, B_BLK, G), lambda b, t: (t, b, 0))
    w_spec = pl.BlockSpec((H, G), lambda b, t: (0, 0))
    out_spec = pl.BlockSpec((1, B_BLK, H), lambda b, t: (0, b, 0))

    k2_vmem = (2 * (T_CHUNK * B_BLK * G * itemsize + H * G * itemsize
                    + 2 * B_BLK * H * 4)
               + 2 * B_BLK * H * 4 + (4 << 20))
    k2_vmem = min(int(k2_vmem), 100 << 20)

    hidden, cell = pl.pallas_call(
        kernel,
        out_shape=(jax.ShapeDtypeStruct((1, B_pad, H), jnp.float32),
                   jax.ShapeDtypeStruct((1, B_pad, H), jnp.float32)),
        grid_spec=pltpu.PrefetchScalarGridSpec(
            num_scalar_prefetch=0,
            grid=(num_b_blocks, num_t_chunks),
            in_specs=[gx_spec, w_spec],
            out_specs=(out_spec, out_spec),
            scratch_shapes=[pltpu.VMEM((B_BLK, H), jnp.float32),
                            pltpu.VMEM((B_BLK, H), jnp.float32)],
        ),
        compiler_params=pltpu.CompilerParams(
            # Batch blocks independent (parallel / megacore); time is serial.
            dimension_semantics=("parallel", "arbitrary"),
            vmem_limit_bytes=k2_vmem),
    )(gates_x, w_hh_cat)

    # Drop batch padding; keep PyTorch's (num_layers=1, B, H) shape.
    return hidden[:, :B, :], cell[:, :B, :]


# ---------------------------------------------------------------------------
# Pure-JAX reference matching PyTorch nn.Embedding + nn.LSTM semantics.
# ---------------------------------------------------------------------------
def encoder_forward_ref(tokens, params):
    emb = params["embedding"]
    w_ih, w_hh = params["w_ih"], params["w_hh"]
    b = params["b_ih"] + params["b_hh"]
    H = emb.shape[1]
    B = tokens.shape[1]
    x = emb[tokens]                                   # (S, B, H)

    def step(carry, x_t):
        h, c = carry
        gates = x_t @ w_ih.T + h @ w_hh.T + b
        i = jax.nn.sigmoid(gates[:, 0 * H:1 * H])
        f = jax.nn.sigmoid(gates[:, 1 * H:2 * H])
        g = jnp.tanh(gates[:, 2 * H:3 * H])
        o = jax.nn.sigmoid(gates[:, 3 * H:4 * H])
        c = f * c + i * g
        h = o * jnp.tanh(c)
        return (h, c), None

    init = (jnp.zeros((B, H), jnp.float32), jnp.zeros((B, H), jnp.float32))
    (h, c), _ = lax.scan(step, init, x)
    return h[None], c[None]


def init_params(key, input_size, hidden_size):
    """Deterministic init mirroring PyTorch defaults (shapes identical)."""
    k_emb, k_wih, k_whh, k_bih, k_bhh = jax.random.split(key, 5)
    bound = 1.0 / math.sqrt(hidden_size)
    return {
        "embedding": jax.random.normal(k_emb, (input_size, hidden_size), jnp.float32),
        "w_ih": jax.random.uniform(k_wih, (4 * hidden_size, hidden_size),
                                   jnp.float32, -bound, bound),
        "w_hh": jax.random.uniform(k_whh, (4 * hidden_size, hidden_size),
                                   jnp.float32, -bound, bound),
        "b_ih": jax.random.uniform(k_bih, (4 * hidden_size,), jnp.float32, -bound, bound),
        "b_hh": jax.random.uniform(k_bhh, (4 * hidden_size,), jnp.float32, -bound, bound),
    }


if __name__ == "__main__":
    # Small shapes consistent with the module: vocab=20, hidden=32, seq=8, batch=2.
    INPUT_SIZE = 20
    HIDDEN_SIZE = 32
    SEQ_LEN = 8
    BATCH = 2

    key = jax.random.PRNGKey(0)
    k_params, k_tok = jax.random.split(key)
    params = init_params(k_params, INPUT_SIZE, HIDDEN_SIZE)
    tokens = jax.random.randint(k_tok, (SEQ_LEN, BATCH), 0, INPUT_SIZE, dtype=jnp.int32)

    hidden, cell = encoder_forward(tokens, params)
    hidden, cell = jax.block_until_ready((hidden, cell))

    h_ref, c_ref = encoder_forward_ref(tokens, params)
    assert hidden.shape == (1, BATCH, HIDDEN_SIZE) and cell.shape == (1, BATCH, HIDDEN_SIZE)
    assert jnp.allclose(hidden, h_ref, atol=1e-5, rtol=1e-5)
    assert jnp.allclose(cell, c_ref, atol=1e-5, rtol=1e-5)

    print("KERNEL_OK")
</pallas_src>

<mosaic_0001>
module attributes {stable_mosaic.version = 11 : i64} {
  func.func @_input_proj_kernel(%arg0: i32, %arg1: memref<64x32xf32, #tpu.memory_space<vmem>>, %arg2: memref<32x128xf32, #tpu.memory_space<vmem>>, %arg3: memref<1x128xf32, #tpu.memory_space<vmem>>, %arg4: memref<64x128xf32, #tpu.memory_space<vmem>>) attributes {dimension_semantics = [#tpu.dimension_semantics<parallel>], iteration_bounds = array<i64: 1>, scalar_prefetch = 0 : i64, scratch_operands = 0 : i64, tpu.core_type = #tpu.core_type<tc>, window_params = [{transform_indices = @transform_0, window_bounds = array<i64: 64, 32>}, {pipeline_mode = #tpu.pipeline_mode<synchronous>, transform_indices = @transform_1, window_bounds = array<i64: 32, 128>}, {pipeline_mode = #tpu.pipeline_mode<synchronous>, transform_indices = @transform_2, window_bounds = array<i64: 1, 128>}, {transform_indices = @transform_3, window_bounds = array<i64: 64, 128>}]} {
    %c0 = arith.constant 0 : index
    %c0_0 = arith.constant 0 : index
    %0 = vector.load %arg1[%c0, %c0_0] : memref<64x32xf32, #tpu.memory_space<vmem>>, vector<64x32xf32>
    %c0_1 = arith.constant 0 : index
    %c0_2 = arith.constant 0 : index
    %1 = vector.load %arg2[%c0_1, %c0_2] : memref<32x128xf32, #tpu.memory_space<vmem>>, vector<32x128xf32>
    %cst = arith.constant dense<0.000000e+00> : vector<64x128xf32>
    %2 = tpu.matmul %0, %1, %cst {dimension_numbers = #tpu.dot_dimension_numbers<[1], [0], [0], [1], [0, 0, 1, 1], [], []>} : vector<64x32xf32>, vector<32x128xf32>, vector<64x128xf32> -> vector<64x128xf32>
    %c0_3 = arith.constant 0 : index
    %c0_4 = arith.constant 0 : index
    %3 = vector.load %arg3[%c0_3, %c0_4] : memref<1x128xf32, #tpu.memory_space<vmem>>, vector<1x128xf32>
    %4 = vector.broadcast %3 : vector<1x128xf32> to vector<64x128xf32>
    %5 = arith.addf %2, %4 : vector<64x128xf32>
    %c0_5 = arith.constant 0 : index
    %c0_6 = arith.constant 0 : index
    %6 = vector.load %arg4[%c0_5, %c0_6] : memref<64x128xf32, #tpu.memory_space<vmem>>, vector<64x128xf32>
    tpu.vector_store %arg4[%c0_5, %c0_6], %5 {strides = array<i32>} : memref<64x128xf32, #tpu.memory_space<vmem>>, vector<64x128xf32>,
    return
  }
  func.func @transform_0(%arg0: i32) -> (i32, i32) {
    %c0_i32 = arith.constant 0 : i32
    %c0_i32_0 = arith.constant 0 : i32
    return %arg0, %c0_i32 : i32, i32
  }
  func.func @transform_1(%arg0: i32) -> (i32, i32) {
    %c0_i32 = arith.constant 0 : i32
    %c0_i32_0 = arith.constant 0 : i32
    %c0_i32_1 = arith.constant 0 : i32
    return %c0_i32, %c0_i32_0 : i32, i32
  }
  func.func @transform_2(%arg0: i32) -> (i32, i32) {
    %c0_i32 = arith.constant 0 : i32
    %c0_i32_0 = arith.constant 0 : i32
    %c0_i32_1 = arith.constant 0 : i32
    return %c0_i32, %c0_i32_0 : i32, i32
  }
  func.func @transform_3(%arg0: i32) -> (i32, i32) {
    %c0_i32 = arith.constant 0 : i32
    %c0_i32_0 = arith.constant 0 : i32
    return %arg0, %c0_i32 : i32, i32
  }
}

</mosaic_0001>

<llo_original>
// kernel: tpu_custom_call.1
$region0: #{tpu_custom_call.1}
  #allocation0 [shape = 'u32[]', space=smem, size = 0x4, offset = 0x4, fixed_abs, tag = 'smem constant byte address 0x4 - core index']
  #allocation1 [shape = 'u32[144,128]{1,0:T(1,128)}', space=vmem, size = 0x12000, scoped, tag = 'internal scratch']
  %s0 = inlined_call_operand.vmem [shape: f32[64,32], index: 0, kind: input, shape index: {}]
  %s1 = inlined_call_operand.vmem [shape: f32[32,128], index: 1, kind: input, shape index: {}]
  %s2 = inlined_call_operand.vmem [shape: f32[1,128], index: 2, kind: input, shape index: {}]
  %s3 = inlined_call_operand.hbm [shape: f32[64,128], index: 3, kind: output, shape index: {}]
  %s4 = sld [smem:[#allocation0]]
  $region22: #{tpu_custom_call.1} parent=0
    _
  %s6 = ssub.s32 1, %s4
  %s7 = scalar_select 0, %s6, %s4
  $region1: #{tpu_custom_call.1} parent=0
    #allocation2 [shape = 'u8[32768]{0}', space=vmem, size = 0x8000, scoped, tag = 'output window, operand 0, single buffered']
    #allocation3 [shape = 's32[1]{0}', space=sflag, size = 0x4, scoped, tag = 'scoped memory for tpu_custom_call.1']
    %8 = vsyncpa [#allocation3], 0
    // Predicated region
    $region2: #{tpu_custom_call.1} parent=1 // pred_check
      _
    $region3: #{tpu_custom_call.1} parent=1 // pred_check_branch
      %10 = sbr.rel (0) target = $region5
    $region4: #{tpu_custom_call.1} parent=1 // pred_region
      _
    $region5: #{tpu_custom_call.1} parent=1 // pred_fallthru
      _
    // Predicated region
    $region6: #{tpu_custom_call.1} parent=1 // pred_check
      _
    $region7: #{tpu_custom_call.1} parent=1 // pred_check_branch
      %12 = sbr.rel (0) target = $region9
    $region8: #{tpu_custom_call.1} parent=1 // pred_region
      _
    $region9: #{tpu_custom_call.1} parent=1 // pred_fallthru
      _
    // Predicated region
    $region10: #{tpu_custom_call.1} parent=1 // pred_check
      _
    $region11: #{tpu_custom_call.1} parent=1 // pred_check_branch
      %14 = sbr.rel (0) target = $region13
    $region12: #{tpu_custom_call.1} parent=1 // pred_region
      _
    $region13: #{tpu_custom_call.1} parent=1 // pred_fallthru
      _
    %v15 = vld [vmem:[%s0] sm:$0xff]
    %v16 = vld [vmem:[%s0 + $0x8] sm:$0xff]
    %v17 = vld [vmem:[%s0 + $0x10] sm:$0xff]
    %v18 = vld [vmem:[%s0 + $0x18] sm:$0xff]
    %v19 = vld [vmem:[%s0 + $0x20] sm:$0xff]
    %v20 = vld [vmem:[%s0 + $0x28] sm:$0xff]
    %v21 = vld [vmem:[%s0 + $0x30] sm:$0xff]
    %v22 = vld [vmem:[%s0 + $0x38] sm:$0xff]
    %v23 = vld [vmem:[%s1] sm:$0xff]
    %v24 = vld [vmem:[%s1 + $0x8] sm:$0xff]
    %v25 = vld [vmem:[%s1 + $0x10] sm:$0xff]
    %v26 = vld [vmem:[%s1 + $0x18] sm:$0xff]
    %v27 = vld [vmem:[%s2] sm:$0x1]
    %v29 = vlaneseq
    %v30 = vshrl.u32 %v29, 7
    %v31 = vsub.s32 0, %v30
    %v32 = vrot.slane %v27, %v31
    %vm34 = vcmask 261120
    %v36 = vsel %vm34, %v15, 0
    %v39 = vsel %vm34, %v16, 0
    %v42 = vsel %vm34, %v17, 0
    %v45 = vsel %vm34, %v18, 0
    %v48 = vsel %vm34, %v19, 0
    %v51 = vsel %vm34, %v20, 0
    %v54 = vsel %vm34, %v21, 0
    %v57 = vsel %vm34, %v22, 0
    %59 = vmatprep.subr.mxu0 0.0
    %60 = vmatpush1.msra.mxu0 %v23
    %61 = vmatprep.subr.mxu0 0.0
    %62 = vmatpush1.msra.mxu0 %v24
    %63 = vmatprep.subr.mxu0 0.0
    %64 = vmatpush1.msra.mxu0 %v25
    %65 = vmatprep.subr.mxu0 0.0
    %66 = vmatpush1.msra.mxu0 %v26
    %67 = vmatprep.subr.mxu0 0.0
    %68 = vmatpush1.msra.mxu0 0.0
    %69 = vmatprep.subr.mxu0 0.0
    %70 = vmatpush1.msra.mxu0 0.0
    %71 = vmatprep.subr.mxu0 0.0
    %72 = vmatpush1.msra.mxu0 0.0
    %73 = vmatprep.subr.mxu0 0.0
    %74 = vmatpush1.msra.mxu0 0.0
    %75 = vmatprep.subr.mxu0 0.0
    %76 = vmatpush1.msra.mxu0 0.0
    %77 = vmatprep.subr.mxu0 0.0
    %78 = vmatpush1.msra.mxu0 0.0
    %79 = vmatprep.subr.mxu0 0.0
    %80 = vmatpush1.msra.mxu0 0.0
    %81 = vmatprep.subr.mxu0 0.0
    %82 = vmatpush1.msra.mxu0 0.0
    %83 = vmatprep.subr.mxu0 0.0
    %84 = vmatpush1.msra.mxu0 0.0
    %85 = vmatprep.subr.mxu0 0.0
    %86 = vmatpush1.msra.mxu0 0.0
    %87 = vmatprep.subr.mxu0 0.0
    %88 = vmatpush1.msra.mxu0 0.0
    %89 = vmatprep.subr.mxu0 0.0
    %90 = vmatpush1.msra.mxu0 0.0
    %91 = vmatprep.subr.mxu0 0.0
    %92 = vmatpush1.msra.mxu0 0.0
    %93 = vmatprep.subr.mxu0 0.0
    %94 = vmatpush1.msra.mxu0 0.0
    %95 = vmatprep.subr.mxu0 0.0
    %96 = vmatpush1.msra.mxu0 0.0
    %97 = vmatprep.subr.mxu0 0.0
    %98 = vmatpush1.msra.mxu0 0.0
    %99 = vmatprep.subr.mxu0 0.0
    %100 = vmatpush1.msra.mxu0 0.0
    %101 = vmatprep.subr.mxu0 0.0
    %102 = vmatpush1.msra.mxu0 0.0
    %103 = vmatprep.subr.mxu0 0.0
    %104 = vmatpush1.msra.mxu0 0.0
    %105 = vmatprep.subr.mxu0 0.0
    %106 = vmatpush1.msra.mxu0 0.0
    %107 = vmatprep.subr.mxu0 0.0
    %108 = vmatpush1.msra.mxu0 0.0
    %109 = vmatprep.subr.mxu0 0.0
    %110 = vmatpush1.msra.mxu0 0.0
    %111 = vmatprep.subr.mxu0 0.0
    %112 = vmatpush1.msra.mxu0 0.0
    %113 = vmatprep.subr.mxu0 0.0
    %114 = vmatpush1.msra.mxu0 0.0
    %115 = vmatprep.subr.mxu0 0.0
    %116 = vmatpush1.msra.mxu0 0.0
    %117 = vmatprep.subr.mxu0 0.0
    %118 = vmatpush1.msra.mxu0 0.0
    %119 = vmatprep.subr.mxu0 0.0
    %120 = vmatpush1.msra.mxu0 0.0
    %121 = vmatprep.subr.mxu0 0.0
    %122 = vmatpush1.msra.mxu0 0.0
    %123 = vmatprep.mubr.f32.mxu0 0.0
    %124 = vmatmul.mubr.f32.gmra.mrb[0].mxu0 %v36
    %v125 = vpop.f32.mrb[0].mxu0
    %v126 = vadd.f32 %v32, %v125
    %v127 = vpop.f32.mrb[0].mxu0
    %128 = vmatprep.mubr.f32.mxu0 0.0
    %129 = vmatmul.mubr.f32.gmra.mrb[0].mxu0 %v39
    %v130 = vpop.f32.mrb[0].mxu0
    %v131 = vadd.f32 %v32, %v130
    %v132 = vpop.f32.mrb[0].mxu0
    %133 = vmatprep.mubr.f32.mxu0 0.0
    %134 = vmatmul.mubr.f32.gmra.mrb[0].mxu0 %v42
    %v135 = vpop.f32.mrb[0].mxu0
    %v136 = vadd.f32 %v32, %v135
    %v137 = vpop.f32.mrb[0].mxu0
    %138 = vmatprep.mubr.f32.mxu0 0.0
    %139 = vmatmul.mubr.f32.gmra.mrb[0].mxu0 %v45
    %v140 = vpop.f32.mrb[0].mxu0
    %v141 = vadd.f32 %v32, %v140
    %v142 = vpop.f32.mrb[0].mxu0
    %143 = vmatprep.mubr.f32.mxu0 0.0
    %144 = vmatmul.mubr.f32.gmra.mrb[0].mxu0 %v48
    %v145 = vpop.f32.mrb[0].mxu0
    %v146 = vadd.f32 %v32, %v145
    %v147 = vpop.f32.mrb[0].mxu0
    %148 = vmatprep.mubr.f32.mxu0 0.0
    %149 = vmatmul.mubr.f32.gmra.mrb[0].mxu0 %v51
    %v150 = vpop.f32.mrb[0].mxu0
    %v151 = vadd.f32 %v32, %v150
    %v152 = vpop.f32.mrb[0].mxu0
    %153 = vmatprep.mubr.f32.mxu0 0.0
    %154 = vmatmul.mubr.f32.gmra.mrb[0].mxu0 %v54
    %v155 = vpop.f32.mrb[0].mxu0
    %v156 = vadd.f32 %v32, %v155
    %v157 = vpop.f32.mrb[0].mxu0
    %158 = vmatprep.mubr.f32.mxu0 0.0
    %159 = vmatmul.mubr.f32.gmra.mrb[0].mxu0 %v57
    %v160 = vpop.f32.mrb[0].mxu0
    %v161 = vadd.f32 %v32, %v160
    %v162 = vpop.f32.mrb[0].mxu0
    %163 = vdwg.mxu0
    %164 = vst [vmem:[#allocation2] sm:$0xff] %v126
    %165 = vst [vmem:[#allocation2 + $0x8] sm:$0xff] %v131
    %166 = vst [vmem:[#allocation2 + $0x10] sm:$0xff] %v136
    %167 = vst [vmem:[#allocation2 + $0x18] sm:$0xff] %v141
    %168 = vst [vmem:[#allocation2 + $0x20] sm:$0xff] %v146
    %169 = vst [vmem:[#allocation2 + $0x28] sm:$0xff] %v151
    %170 = vst [vmem:[#allocation2 + $0x30] sm:$0xff] %v156
    %171 = vst [vmem:[#allocation2 + $0x38] sm:$0xff] %v161
    // Predicated region
    $region14: #{tpu_custom_call.1} parent=1 // pred_check
      _
    $region15: #{tpu_custom_call.1} parent=1 // pred_check_branch
      %173 = sbr.rel (0) target = $region17
    $region16: #{tpu_custom_call.1} parent=1 // pred_region
      %s175 = ssub.s32 1024, 1024
      %176 = vsyncadd [#allocation3], %s175
      %s177 = sshll.u32 [#allocation2], 4
      %s178 = int_to_ptr.vmem [resolvable:$true] %s177
      %183 = dma.vmem_to_hbm [thread:$0]  %s178, 1024, %s3, [#allocation3], 128, 128, 8
    $region17: #{tpu_custom_call.1} parent=1 // pred_fallthru
      _
    // Predicated region
    $region18: #{tpu_custom_call.1} parent=1 // pred_check
      _
    $region19: #{tpu_custom_call.1} parent=1 // pred_check_branch
      %185 = sbr.rel (0) target = $region21
    $region20: #{tpu_custom_call.1} parent=1 // pred_region
      %186 = dma.done [#allocation3], 1024
    $region21: #{tpu_custom_call.1} parent=1 // pred_fallthru
      _
    %187 = vsyncpa [#allocation3], 1

</llo_original>
